<compile_context>
chip_gen: v5e
topology: v5e:2x2
jax: 0.10.0
libtpu: 0.0.40
codegen_flags: <defaults>
</compile_context>

<pallas_src>
import jax
import jax.numpy as jnp
from jax import lax
from jax.experimental import pallas as pl
from jax.experimental.pallas import tpu as pltpu


# ---------------------------------------------------------------------------
# Fused kernel
# ---------------------------------------------------------------------------
def _make_fused_kernel(N, H, W, Cin_p, Cout, eps):
    HW = H * W
    NHW = N * HW

    def kernel(x_ref, w1_ref, w2_ref, masks_ref, pp_ref, o_ref):
        # x_ref    : (Cin_p, N*HW)   activations, channels on sublanes, batch on lanes
        # w1_ref   : (Cout, 9*Cin_p) tap-packed conv1 weights (k = t*Cin_p + c, t = ky*3+kx)
        # w2_ref   : (Cout, 9*Cout)  tap-packed conv2 weights
        # masks_ref: (9, N*HW)       precomputed zero-padding masks per tap
        # pp_ref   : (Cout, 4)       packed [conv1_b, gamma, beta, conv2_b]
        # o_ref    : (N, Cout, HW)   lane-dense output (HW = multiple of 128)

        masks = masks_ref[...]                      # (9, NHW)
        b1 = pp_ref[:, 0:1]                         # (Cout, 1) — hoisted, read once
        gamma = pp_ref[:, 1:2]
        beta = pp_ref[:, 2:3]
        b2 = pp_ref[:, 3:4]

        def taps_stack(x_cf):
            # x_cf: (C, NHW) -> (9*C, NHW): shifted + boundary-masked copy per tap.
            pieces = []
            for t in range(9):
                dy, dx = t // 3 - 1, t % 3 - 1
                off = dy * W + dx
                if off == 0:
                    pieces.append(x_cf)             # center tap: no shift, mask == 1
                else:
                    sh = pltpu.roll(x_cf, (-off) % NHW, 1)   # XLU lane rotate (batched)
                    pieces.append(sh * masks[t:t + 1, :])    # zero-padding + anti-wrap
            return jnp.concatenate(pieces, axis=0)  # sublane-aligned (C multiple of 8)

        # ---- conv1 + bias + ReLU : ONE MXU matmul for all taps and all N ----
        xs1 = taps_stack(x_ref[...])                                     # (9*Cin_p, NHW)
        y1 = jnp.dot(w1_ref[...], xs1, preferred_element_type=jnp.float32) + b1
        y1 = jnp.maximum(y1, 0.0)                                        # (Cout, NHW)

        # ---- training-mode BatchNorm statistics (two-pass, biased variance) ----
        inv_count = 1.0 / float(NHW)                # N*H*W elements per channel
        mean = y1.sum(axis=1, keepdims=True) * inv_count                 # (Cout, 1)
        var = ((y1 - mean) ** 2).sum(axis=1, keepdims=True) * inv_count
        scale = gamma * lax.rsqrt(var + eps)
        shift = beta - mean * scale
        ybn = y1 * scale + shift                                         # (Cout, NHW)

        # ---- conv2 + bias : ONE MXU matmul ----
        xs2 = taps_stack(ybn)                                            # (9*Cout, NHW)
        y2 = jnp.dot(w2_ref[...], xs2, preferred_element_type=jnp.float32) + b2

        # Lane-dense per-image stores (each slice is HW = 256 lanes, 128-aligned).
        for n in range(N):
            o_ref[n] = y2[:, n * HW:(n + 1) * HW]

    return kernel


# ---------------------------------------------------------------------------
# Wrapper (NCHW in / NCHW out, like the PyTorch module)
# ---------------------------------------------------------------------------
def first_conv_block_forward(x_nchw, params, eps=1e-5):
    N, Cin, H, W = x_nchw.shape
    Cout = params["conv1_w"].shape[0]
    HW = H * W
    NHW = N * HW
    Cin_p = ((Cin + 7) // 8) * 8                   # pad input channels to sublane quantum

    # Batch-on-lanes activation layout: (Cin_p, N*HW). Tiny one-time transpose.
    x_cf = jnp.transpose(x_nchw, (1, 0, 2, 3)).reshape(Cin, NHW)
    if Cin_p != Cin:
        x_cf = jnp.concatenate(
            [x_cf, jnp.zeros((Cin_p - Cin, NHW), x_cf.dtype)], axis=0)

    # Tap-packed weights: OIHW -> (O, ky, kx, I) -> (O, 9*I), zero-padded I for conv1.
    w1 = params["conv1_w"]
    if Cin_p != Cin:
        w1 = jnp.concatenate(
            [w1, jnp.zeros((Cout, Cin_p - Cin, 3, 3), w1.dtype)], axis=1)
    w1_p = jnp.transpose(w1, (0, 2, 3, 1)).reshape(Cout, 9 * Cin_p)
    w2_p = jnp.transpose(params["conv2_w"], (0, 2, 3, 1)).reshape(Cout, 9 * Cout)

    # Packed per-channel params: [conv1_b, gamma, beta, conv2_b] -> (Cout, 4), one DMA.
    pp = jnp.stack([params["conv1_b"], params["bn_gamma"],
                    params["bn_beta"], params["conv2_b"]], axis=1)

    # Precomputed zero-padding masks, (9, N*HW): 1 where (h+dy, w+dx) is in-bounds.
    lane = jnp.arange(NHW, dtype=jnp.int32)
    hh = (lane % HW) // W
    ww = (lane % HW) % W
    mlist = []
    for t in range(9):
        dy, dx = t // 3 - 1, t % 3 - 1
        m = (hh + dy >= 0) & (hh + dy < H) & (ww + dx >= 0) & (ww + dx < W)
        mlist.append(m)
    masks = jnp.stack(mlist, axis=0).astype(jnp.float32)

    kernel = _make_fused_kernel(N, H, W, Cin_p, Cout, eps)

    flops = 2 * NHW * Cout * 9 * (Cin_p + Cout) + 12 * NHW * Cout
    bytes_accessed = 4 * (x_cf.size + w1_p.size + w2_p.size + masks.size
                          + pp.size + N * Cout * HW)
    out = pl.pallas_call(
        kernel,
        out_shape=jax.ShapeDtypeStruct((N, Cout, HW), jnp.float32),
        cost_estimate=pl.CostEstimate(flops=flops, transcendentals=Cout,
                                      bytes_accessed=bytes_accessed),
    )(x_cf, w1_p, w2_p, masks, pp)
    return out.reshape(N, Cout, H, W)


# ---------------------------------------------------------------------------
# Pure-JAX reference for verification
# ---------------------------------------------------------------------------
def reference_forward(x_nchw, params, eps=1e-5):
    dn = ("NCHW", "OIHW", "NCHW")
    y = lax.conv_general_dilated(x_nchw, params["conv1_w"], (1, 1), "SAME",
                                 dimension_numbers=dn)
    y = y + params["conv1_b"][None, :, None, None]
    y = jnp.maximum(y, 0.0)
    mean = y.mean(axis=(0, 2, 3), keepdims=True)
    var = y.var(axis=(0, 2, 3), keepdims=True)
    yn = ((y - mean) * lax.rsqrt(var + eps)
          * params["bn_gamma"][None, :, None, None]
          + params["bn_beta"][None, :, None, None])
    out = lax.conv_general_dilated(yn, params["conv2_w"], (1, 1), "SAME",
                                   dimension_numbers=dn)
    return out + params["conv2_b"][None, :, None, None]


if __name__ == "__main__":
    N, Cin, Cout, H, W = 2, 4, 8, 16, 16

    key = jax.random.PRNGKey(0)
    k = jax.random.split(key, 7)
    params = {
        "conv1_w": jax.random.normal(k[0], (Cout, Cin, 3, 3), jnp.float32) * 0.1,
        "conv1_b": jax.random.normal(k[1], (Cout,), jnp.float32) * 0.1,
        "bn_gamma": 1.0 + jax.random.normal(k[2], (Cout,), jnp.float32) * 0.1,
        "bn_beta": jax.random.normal(k[3], (Cout,), jnp.float32) * 0.1,
        "conv2_w": jax.random.normal(k[4], (Cout, Cout, 3, 3), jnp.float32) * 0.1,
        "conv2_b": jax.random.normal(k[5], (Cout,), jnp.float32) * 0.1,
    }
    x = jax.random.normal(k[6], (N, Cin, H, W), jnp.float32)

    out = first_conv_block_forward(x, params)
    out = jax.block_until_ready(out)

    ref = reference_forward(x, params)
    assert out.shape == (N, Cout, H, W), out.shape
    assert jnp.allclose(out, ref, atol=1e-3, rtol=1e-3), \
        float(jnp.max(jnp.abs(out - ref)))

    print("KERNEL_OK")
</pallas_src>

<mosaic_0001>
module attributes {stable_mosaic.version = 11 : i64} {
  func.func @kernel(%arg0: memref<8x512xf32, #tpu.memory_space<vmem>>, %arg1: memref<8x72xf32, #tpu.memory_space<vmem>>, %arg2: memref<8x72xf32, #tpu.memory_space<vmem>>, %arg3: memref<9x512xf32, #tpu.memory_space<vmem>>, %arg4: memref<8x4xf32, #tpu.memory_space<vmem>>, %arg5: memref<2x8x256xf32, #tpu.memory_space<vmem>>) attributes {dimension_semantics = [], scalar_prefetch = 0 : i64, scratch_operands = 0 : i64, tpu.core_type = #tpu.core_type<tc>} {
    %c0 = arith.constant 0 : index
    %c0_0 = arith.constant 0 : index
    %0 = vector.load %arg3[%c0, %c0_0] : memref<9x512xf32, #tpu.memory_space<vmem>>, vector<9x512xf32>
    %c0_1 = arith.constant 0 : index
    %c0_2 = arith.constant 0 : index
    %1 = vector.load %arg4[%c0_1, %c0_2] : memref<8x4xf32, #tpu.memory_space<vmem>>, vector<8x1xf32>
    %c0_3 = arith.constant 0 : index
    %c1 = arith.constant 1 : index
    %2 = vector.load %arg4[%c0_3, %c1] : memref<8x4xf32, #tpu.memory_space<vmem>>, vector<8x1xf32>
    %c0_4 = arith.constant 0 : index
    %c2 = arith.constant 2 : index
    %3 = vector.load %arg4[%c0_4, %c2] : memref<8x4xf32, #tpu.memory_space<vmem>>, vector<8x1xf32>
    %c0_5 = arith.constant 0 : index
    %c3 = arith.constant 3 : index
    %4 = vector.load %arg4[%c0_5, %c3] : memref<8x4xf32, #tpu.memory_space<vmem>>, vector<8x1xf32>
    %c0_6 = arith.constant 0 : index
    %c0_7 = arith.constant 0 : index
    %5 = vector.load %arg0[%c0_6, %c0_7] : memref<8x512xf32, #tpu.memory_space<vmem>>, vector<8x512xf32>
    %c17_i32 = arith.constant 17 : i32
    %6 = tpu.dynamic_rotate %5 by %c17_i32 dim 1 : vector<8x512xf32>, i32 -> vector<8x512xf32>
    %7 = vector.extract_strided_slice %0 {offsets = [0, 0], sizes = [1, 512], strides = [1, 1]} : vector<9x512xf32> to vector<1x512xf32>
    %8 = vector.broadcast %7 : vector<1x512xf32> to vector<8x512xf32>
    %9 = arith.mulf %6, %8 : vector<8x512xf32>
    %c16_i32 = arith.constant 16 : i32
    %10 = tpu.dynamic_rotate %5 by %c16_i32 dim 1 : vector<8x512xf32>, i32 -> vector<8x512xf32>
    %11 = vector.extract_strided_slice %0 {offsets = [1, 0], sizes = [1, 512], strides = [1, 1]} : vector<9x512xf32> to vector<1x512xf32>
    %12 = vector.broadcast %11 : vector<1x512xf32> to vector<8x512xf32>
    %13 = arith.mulf %10, %12 : vector<8x512xf32>
    %c15_i32 = arith.constant 15 : i32
    %14 = tpu.dynamic_rotate %5 by %c15_i32 dim 1 : vector<8x512xf32>, i32 -> vector<8x512xf32>
    %15 = vector.extract_strided_slice %0 {offsets = [2, 0], sizes = [1, 512], strides = [1, 1]} : vector<9x512xf32> to vector<1x512xf32>
    %16 = vector.broadcast %15 : vector<1x512xf32> to vector<8x512xf32>
    %17 = arith.mulf %14, %16 : vector<8x512xf32>
    %c1_i32 = arith.constant 1 : i32
    %18 = tpu.dynamic_rotate %5 by %c1_i32 dim 1 : vector<8x512xf32>, i32 -> vector<8x512xf32>
    %19 = vector.extract_strided_slice %0 {offsets = [3, 0], sizes = [1, 512], strides = [1, 1]} : vector<9x512xf32> to vector<1x512xf32>
    %20 = vector.broadcast %19 : vector<1x512xf32> to vector<8x512xf32>
    %21 = arith.mulf %18, %20 : vector<8x512xf32>
    %c511_i32 = arith.constant 511 : i32
    %22 = tpu.dynamic_rotate %5 by %c511_i32 dim 1 : vector<8x512xf32>, i32 -> vector<8x512xf32>
    %23 = vector.extract_strided_slice %0 {offsets = [5, 0], sizes = [1, 512], strides = [1, 1]} : vector<9x512xf32> to vector<1x512xf32>
    %24 = vector.broadcast %23 : vector<1x512xf32> to vector<8x512xf32>
    %25 = arith.mulf %22, %24 : vector<8x512xf32>
    %c497_i32 = arith.constant 497 : i32
    %26 = tpu.dynamic_rotate %5 by %c497_i32 dim 1 : vector<8x512xf32>, i32 -> vector<8x512xf32>
    %27 = vector.extract_strided_slice %0 {offsets = [6, 0], sizes = [1, 512], strides = [1, 1]} : vector<9x512xf32> to vector<1x512xf32>
    %28 = vector.broadcast %27 : vector<1x512xf32> to vector<8x512xf32>
    %29 = arith.mulf %26, %28 : vector<8x512xf32>
    %c496_i32 = arith.constant 496 : i32
    %30 = tpu.dynamic_rotate %5 by %c496_i32 dim 1 : vector<8x512xf32>, i32 -> vector<8x512xf32>
    %31 = vector.extract_strided_slice %0 {offsets = [7, 0], sizes = [1, 512], strides = [1, 1]} : vector<9x512xf32> to vector<1x512xf32>
    %32 = vector.broadcast %31 : vector<1x512xf32> to vector<8x512xf32>
    %33 = arith.mulf %30, %32 : vector<8x512xf32>
    %c495_i32 = arith.constant 495 : i32
    %34 = tpu.dynamic_rotate %5 by %c495_i32 dim 1 : vector<8x512xf32>, i32 -> vector<8x512xf32>
    %35 = vector.extract_strided_slice %0 {offsets = [8, 0], sizes = [1, 512], strides = [1, 1]} : vector<9x512xf32> to vector<1x512xf32>
    %36 = vector.broadcast %35 : vector<1x512xf32> to vector<8x512xf32>
    %37 = arith.mulf %34, %36 : vector<8x512xf32>
    %38 = tpu.concatenate %9, %13, %17, %21, %5, %25, %29, %33, %37 in 0 : vector<8x512xf32>, vector<8x512xf32>, vector<8x512xf32>, vector<8x512xf32>, vector<8x512xf32>, vector<8x512xf32>, vector<8x512xf32>, vector<8x512xf32>, vector<8x512xf32> -> vector<72x512xf32>
    %c0_8 = arith.constant 0 : index
    %c0_9 = arith.constant 0 : index
    %39 = vector.load %arg1[%c0_8, %c0_9] : memref<8x72xf32, #tpu.memory_space<vmem>>, vector<8x72xf32>
    %cst = arith.constant dense<0.000000e+00> : vector<8x512xf32>
    %40 = tpu.matmul %39, %38, %cst {dimension_numbers = #tpu.dot_dimension_numbers<[1], [0], [0], [1], [0, 0, 1, 1], [], []>} : vector<8x72xf32>, vector<72x512xf32>, vector<8x512xf32> -> vector<8x512xf32>
    %41 = vector.broadcast %1 : vector<8x1xf32> to vector<8x512xf32>
    %42 = arith.addf %40, %41 : vector<8x512xf32>
    %cst_10 = arith.constant 0.000000e+00 : f32
    %43 = vector.broadcast %cst_10 : f32 to vector<8x512xf32>
    %44 = arith.maximumf %42, %43 : vector<8x512xf32>
    %cst_11 = arith.constant dense<0.000000e+00> : vector<8xf32>
    %45 = vector.multi_reduction <add>, %44, %cst_11 [1] : vector<8x512xf32> to vector<8xf32>
    %46 = vector.shape_cast %45 : vector<8xf32> to vector<8x1xf32>
    %cst_12 = arith.constant 0.001953125 : f32
    %47 = vector.broadcast %cst_12 : f32 to vector<8x1xf32>
    %48 = arith.mulf %46, %47 : vector<8x1xf32>
    %49 = vector.broadcast %48 : vector<8x1xf32> to vector<8x512xf32>
    %50 = arith.subf %44, %49 : vector<8x512xf32>
    %51 = arith.mulf %50, %50 : vector<8x512xf32>
    %cst_13 = arith.constant dense<0.000000e+00> : vector<8xf32>
    %52 = vector.multi_reduction <add>, %51, %cst_13 [1] : vector<8x512xf32> to vector<8xf32>
    %53 = vector.shape_cast %52 : vector<8xf32> to vector<8x1xf32>
    %cst_14 = arith.constant 0.001953125 : f32
    %54 = vector.broadcast %cst_14 : f32 to vector<8x1xf32>
    %55 = arith.mulf %53, %54 : vector<8x1xf32>
    %cst_15 = arith.constant 9.99999974E-6 : f32
    %56 = vector.broadcast %cst_15 : f32 to vector<8x1xf32>
    %57 = arith.addf %55, %56 : vector<8x1xf32>
    %58 = math.rsqrt %57 : vector<8x1xf32>
    %59 = arith.mulf %2, %58 : vector<8x1xf32>
    %60 = arith.mulf %48, %59 : vector<8x1xf32>
    %61 = arith.subf %3, %60 : vector<8x1xf32>
    %62 = vector.broadcast %59 : vector<8x1xf32> to vector<8x512xf32>
    %63 = arith.mulf %44, %62 : vector<8x512xf32>
    %64 = vector.broadcast %61 : vector<8x1xf32> to vector<8x512xf32>
    %65 = arith.addf %63, %64 : vector<8x512xf32>
    %c17_i32_16 = arith.constant 17 : i32
    %66 = tpu.dynamic_rotate %65 by %c17_i32_16 dim 1 : vector<8x512xf32>, i32 -> vector<8x512xf32>
    %67 = vector.extract_strided_slice %0 {offsets = [0, 0], sizes = [1, 512], strides = [1, 1]} : vector<9x512xf32> to vector<1x512xf32>
    %68 = vector.broadcast %67 : vector<1x512xf32> to vector<8x512xf32>
    %69 = arith.mulf %66, %68 : vector<8x512xf32>
    %c16_i32_17 = arith.constant 16 : i32
    %70 = tpu.dynamic_rotate %65 by %c16_i32_17 dim 1 : vector<8x512xf32>, i32 -> vector<8x512xf32>
    %71 = vector.extract_strided_slice %0 {offsets = [1, 0], sizes = [1, 512], strides = [1, 1]} : vector<9x512xf32> to vector<1x512xf32>
    %72 = vector.broadcast %71 : vector<1x512xf32> to vector<8x512xf32>
    %73 = arith.mulf %70, %72 : vector<8x512xf32>
    %c15_i32_18 = arith.constant 15 : i32
    %74 = tpu.dynamic_rotate %65 by %c15_i32_18 dim 1 : vector<8x512xf32>, i32 -> vector<8x512xf32>
    %75 = vector.extract_strided_slice %0 {offsets = [2, 0], sizes = [1, 512], strides = [1, 1]} : vector<9x512xf32> to vector<1x512xf32>
    %76 = vector.broadcast %75 : vector<1x512xf32> to vector<8x512xf32>
    %77 = arith.mulf %74, %76 : vector<8x512xf32>
    %c1_i32_19 = arith.constant 1 : i32
    %78 = tpu.dynamic_rotate %65 by %c1_i32_19 dim 1 : vector<8x512xf32>, i32 -> vector<8x512xf32>
    %79 = vector.extract_strided_slice %0 {offsets = [3, 0], sizes = [1, 512], strides = [1, 1]} : vector<9x512xf32> to vector<1x512xf32>
    %80 = vector.broadcast %79 : vector<1x512xf32> to vector<8x512xf32>
    %81 = arith.mulf %78, %80 : vector<8x512xf32>
    %c511_i32_20 = arith.constant 511 : i32
    %82 = tpu.dynamic_rotate %65 by %c511_i32_20 dim 1 : vector<8x512xf32>, i32 -> vector<8x512xf32>
    %83 = vector.extract_strided_slice %0 {offsets = [5, 0], sizes = [1, 512], strides = [1, 1]} : vector<9x512xf32> to vector<1x512xf32>
    %84 = vector.broadcast %83 : vector<1x512xf32> to vector<8x512xf32>
    %85 = arith.mulf %82, %84 : vector<8x512xf32>
    %c497_i32_21 = arith.constant 497 : i32
    %86 = tpu.dynamic_rotate %65 by %c497_i32_21 dim 1 : vector<8x512xf32>, i32 -> vector<8x512xf32>
    %87 = vector.extract_strided_slice %0 {offsets = [6, 0], sizes = [1, 512], strides = [1, 1]} : vector<9x512xf32> to vector<1x512xf32>
    %88 = vector.broadcast %87 : vector<1x512xf32> to vector<8x512xf32>
    %89 = arith.mulf %86, %88 : vector<8x512xf32>
    %c496_i32_22 = arith.constant 496 : i32
    %90 = tpu.dynamic_rotate %65 by %c496_i32_22 dim 1 : vector<8x512xf32>, i32 -> vector<8x512xf32>
    %91 = vector.extract_strided_slice %0 {offsets = [7, 0], sizes = [1, 512], strides = [1, 1]} : vector<9x512xf32> to vector<1x512xf32>
    %92 = vector.broadcast %91 : vector<1x512xf32> to vector<8x512xf32>
    %93 = arith.mulf %90, %92 : vector<8x512xf32>
    %c495_i32_23 = arith.constant 495 : i32
    %94 = tpu.dynamic_rotate %65 by %c495_i32_23 dim 1 : vector<8x512xf32>, i32 -> vector<8x512xf32>
    %95 = vector.extract_strided_slice %0 {offsets = [8, 0], sizes = [1, 512], strides = [1, 1]} : vector<9x512xf32> to vector<1x512xf32>
    %96 = vector.broadcast %95 : vector<1x512xf32> to vector<8x512xf32>
    %97 = arith.mulf %94, %96 : vector<8x512xf32>
    %98 = tpu.concatenate %69, %73, %77, %81, %65, %85, %89, %93, %97 in 0 : vector<8x512xf32>, vector<8x512xf32>, vector<8x512xf32>, vector<8x512xf32>, vector<8x512xf32>, vector<8x512xf32>, vector<8x512xf32>, vector<8x512xf32>, vector<8x512xf32> -> vector<72x512xf32>
    %c0_24 = arith.constant 0 : index
    %c0_25 = arith.constant 0 : index
    %99 = vector.load %arg2[%c0_24, %c0_25] : memref<8x72xf32, #tpu.memory_space<vmem>>, vector<8x72xf32>
    %cst_26 = arith.constant dense<0.000000e+00> : vector<8x512xf32>
    %100 = tpu.matmul %99, %98, %cst_26 {dimension_numbers = #tpu.dot_dimension_numbers<[1], [0], [0], [1], [0, 0, 1, 1], [], []>} : vector<8x72xf32>, vector<72x512xf32>, vector<8x512xf32> -> vector<8x512xf32>
    %101 = vector.broadcast %4 : vector<8x1xf32> to vector<8x512xf32>
    %102 = arith.addf %100, %101 : vector<8x512xf32>
    %103 = vector.extract_strided_slice %102 {offsets = [0, 0], sizes = [8, 256], strides = [1, 1]} : vector<8x512xf32> to vector<8x256xf32>
    %c0_27 = arith.constant 0 : index
    %c0_28 = arith.constant 0 : index
    %c0_29 = arith.constant 0 : index
    %104 = vector.load %arg5[%c0_27, %c0_28, %c0_29] : memref<2x8x256xf32, #tpu.memory_space<vmem>>, vector<1x8x256xf32>
    %105 = vector.shape_cast %104 : vector<1x8x256xf32> to vector<8x256xf32>
    %106 = vector.shape_cast %103 : vector<8x256xf32> to vector<1x8x256xf32>
    tpu.vector_store %arg5[%c0_27, %c0_28, %c0_29], %106 {strides = array<i32>} : memref<2x8x256xf32, #tpu.memory_space<vmem>>, vector<1x8x256xf32>,
    %107 = vector.extract_strided_slice %102 {offsets = [0, 256], sizes = [8, 256], strides = [1, 1]} : vector<8x512xf32> to vector<8x256xf32>
    %c1_30 = arith.constant 1 : index
    %c0_31 = arith.constant 0 : index
    %c0_32 = arith.constant 0 : index
    %108 = vector.load %arg5[%c1_30, %c0_31, %c0_32] : memref<2x8x256xf32, #tpu.memory_space<vmem>>, vector<1x8x256xf32>
    %109 = vector.shape_cast %108 : vector<1x8x256xf32> to vector<8x256xf32>
    %110 = vector.shape_cast %107 : vector<8x256xf32> to vector<1x8x256xf32>
    tpu.vector_store %arg5[%c1_30, %c0_31, %c0_32], %110 {strides = array<i32>} : memref<2x8x256xf32, #tpu.memory_space<vmem>>, vector<1x8x256xf32>,
    return
  }
}

</mosaic_0001>

<llo_original>
// kernel: tpu_custom_call.1
$region0: #{tpu_custom_call.1}
  #allocation0 [shape = 'u32[]', space=smem, size = 0x4, offset = 0x4, fixed_abs, tag = 'smem constant byte address 0x4 - core index']
  #allocation1 [shape = 'u32[72,128]{1,0:T(1,128)}', space=vmem, size = 0x9000, scoped, tag = 'internal scratch']
  %s0 = inlined_call_operand.hbm [shape: f32[8,512], index: 0, kind: input, shape index: {}]
  %s1 = inlined_call_operand.vmem [shape: f32[8,72], index: 1, kind: input, shape index: {}]
  %s2 = inlined_call_operand.hbm [shape: f32[8,72], index: 2, kind: input, shape index: {}]
  %s3 = inlined_call_operand.hbm [shape: f32[9,512], index: 3, kind: input, shape index: {}]
  %s4 = inlined_call_operand.vmem [shape: f32[8,4], index: 4, kind: input, shape index: {}]
  %s5 = inlined_call_operand.hbm [shape: f32[2,8,256], index: 5, kind: output, shape index: {}]
  %s6 = sld [smem:[#allocation0]]
  $region42: #{tpu_custom_call.1} parent=0
    _
  %s8 = ssub.s32 1, %s6
  %s9 = scalar_select 0, %s8, %s6
  $region1: #{tpu_custom_call.1} parent=0
    #allocation2 [shape = 'u8[16384]{0}', space=vmem, size = 0x4000, scoped, tag = 'input window, operand 0, single buffered']
    #allocation3 [shape = 's32[1]{0}', space=sflag, size = 0x4, scoped, tag = 'scoped memory for tpu_custom_call.1']
    #allocation4 [shape = 's32[1]{0}', space=sflag, size = 0x4, scoped, tag = 'scoped memory for tpu_custom_call.1']
    #allocation5 [shape = 'u8[4096]{0}', space=vmem, size = 0x1000, scoped, tag = 'input window, operand 2, single buffered']
    #allocation6 [shape = 's32[1]{0}', space=sflag, size = 0x4, scoped, tag = 'scoped memory for tpu_custom_call.1']
    #allocation7 [shape = 'u8[32768]{0}', space=vmem, size = 0x8000, scoped, tag = 'input window, operand 3, single buffered']
    #allocation8 [shape = 'u8[16384]{0}', space=vmem, size = 0x4000, scoped, tag = 'output window, operand 0, single buffered']
    %10 = vsyncpa [#allocation3], 0
    %11 = vsyncpa [#allocation6], 0
    %12 = vsyncpa [#allocation4], 0
    // Predicated region
    $region2: #{tpu_custom_call.1} parent=1 // pred_check
      _
    $region3: #{tpu_custom_call.1} parent=1 // pred_check_branch
      %14 = sbr.rel (0) target = $region5
    $region4: #{tpu_custom_call.1} parent=1 // pred_region
      %16 = vsyncadd [#allocation3], 0
      %s18 = sshll.u32 %s0, 4
      %s19 = int_to_ptr.hbm [resolvable:$true] %s18
      %s20 = sshll.u32 [#allocation2], 4
      %s21 = int_to_ptr.vmem [resolvable:$true] %s20
      %23 = dma.hbm_to_vmem [thread:$0]  %s19, 512, %s21, [#allocation3]
    $region5: #{tpu_custom_call.1} parent=1 // pred_fallthru
      _
    // Predicated region
    $region6: #{tpu_custom_call.1} parent=1 // pred_check
      _
    $region7: #{tpu_custom_call.1} parent=1 // pred_check_branch
      %25 = sbr.rel (0) target = $region9
    $region8: #{tpu_custom_call.1} parent=1 // pred_region
      _
    $region9: #{tpu_custom_call.1} parent=1 // pred_fallthru
      _
    // Predicated region
    $region10: #{tpu_custom_call.1} parent=1 // pred_check
      _
    $region11: #{tpu_custom_call.1} parent=1 // pred_check_branch
      %27 = sbr.rel (0) target = $region13
    $region12: #{tpu_custom_call.1} parent=1 // pred_region
      %29 = vsyncadd [#allocation6], 0
      %s31 = sshll.u32 %s2, 4
      %s32 = int_to_ptr.hbm [resolvable:$true] %s31
      %s33 = sshll.u32 [#allocation5], 4
      %s34 = int_to_ptr.vmem [resolvable:$true] %s33
      %36 = dma.hbm_to_vmem [thread:$0]  %s32, 128, %s34, [#allocation6]
    $region13: #{tpu_custom_call.1} parent=1 // pred_fallthru
      _
    // Predicated region
    $region14: #{tpu_custom_call.1} parent=1 // pred_check
      _
    $region15: #{tpu_custom_call.1} parent=1 // pred_check_branch
      %38 = sbr.rel (0) target = $region17
    $region16: #{tpu_custom_call.1} parent=1 // pred_region
      %40 = vsyncadd [#allocation6], 0
      %s41 = sshll.u32 %s3, 4
      %s42 = int_to_ptr.hbm [resolvable:$true] %s41
      %s43 = sshll.u32 [#allocation7], 4
      %s44 = int_to_ptr.vmem [resolvable:$true] %s43
      %49 = dma.hbm_to_vmem [thread:$0]  %s42, 1024, %s44, [#allocation6], 512, 512, 32
    $region17: #{tpu_custom_call.1} parent=1 // pred_fallthru
      _
    // Predicated region
    $region18: #{tpu_custom_call.1} parent=1 // pred_check
      _
    $region19: #{tpu_custom_call.1} parent=1 // pred_check_branch
      %51 = sbr.rel (0) target = $region21
    $region20: #{tpu_custom_call.1} parent=1 // pred_region
      _
    $region21: #{tpu_custom_call.1} parent=1 // pred_fallthru
      _
    // Predicated region
    $region22: #{tpu_custom_call.1} parent=1 // pred_check
      _
    $region23: #{tpu_custom_call.1} parent=1 // pred_check_branch
      %53 = sbr.rel (0) target = $region25
    $region24: #{tpu_custom_call.1} parent=1 // pred_region
      %55 = dma.done [#allocation3], 512
    $region25: #{tpu_custom_call.1} parent=1 // pred_fallthru
      _
    // Predicated region
    $region26: #{tpu_custom_call.1} parent=1 // pred_check
      _
    $region27: #{tpu_custom_call.1} parent=1 // pred_check_branch
      %57 = sbr.rel (0) target = $region29
    $region28: #{tpu_custom_call.1} parent=1 // pred_region
      %59 = dma.done [#allocation6], 128
    $region29: #{tpu_custom_call.1} parent=1 // pred_fallthru
      _
    // Predicated region
    $region30: #{tpu_custom_call.1} parent=1 // pred_check
      _
    $region31: #{tpu_custom_call.1} parent=1 // pred_check_branch
      %61 = sbr.rel (0) target = $region33
    $region32: #{tpu_custom_call.1} parent=1 // pred_region
      %63 = dma.done [#allocation6], 1024
    $region33: #{tpu_custom_call.1} parent=1 // pred_fallthru
      _
    %v64 = vld [vmem:[#allocation7] sm:$0xff]
    %v65 = vld [vmem:[#allocation7 + $0x8] sm:$0xff]
    %v66 = vld [vmem:[#allocation7 + $0x10] sm:$0xff]
    %v67 = vld [vmem:[#allocation7 + $0x18] sm:$0xff]
    %v68 = vld [vmem:[#allocation7 + $0x20] sm:$0x1]
    %v69 = vld [vmem:[#allocation7 + $0x28] sm:$0x1]
    %v70 = vld [vmem:[#allocation7 + $0x30] sm:$0x1]
    %v71 = vld [vmem:[#allocation7 + $0x38] sm:$0x1]
    %v72 = vld [vmem:[%s4] sm:$0xff]
    %v73 = vld [vmem:[#allocation2] sm:$0xff]
    %v74 = vld [vmem:[#allocation2 + $0x8] sm:$0xff]
    %v75 = vld [vmem:[#allocation2 + $0x10] sm:$0xff]
    %v76 = vld [vmem:[#allocation2 + $0x18] sm:$0xff]
    %77 = vrot.lane.b32.xlu0 %v73, 17
    %v78 = vpop.permute.xlu0 %77
    %79 = vrot.lane.b32.xlu0 %v74, 17
    %v80 = vpop.permute.xlu0 %79
    %81 = vrot.lane.b32.xlu0 %v75, 17
    %v82 = vpop.permute.xlu0 %81
    %83 = vrot.lane.b32.xlu0 %v76, 17
    %v84 = vpop.permute.xlu0 %83
    %v85 = vlaneseq
    %v86 = vand.u32 %v85, 127
    %vm87 = vcmp.lt.s32.totalorder %v86, 17
    %v88 = vsel %vm87, %v82, %v84
    %v89 = vsel %vm87, %v80, %v82
    %v90 = vsel %vm87, %v78, %v80
    %v91 = vsel %vm87, %v84, %v78
    %v92 = vperm.slane %v64, 0
    %v93 = vperm.slane %v65, 0
    %v94 = vperm.slane %v66, 0
    %v95 = vperm.slane %v67, 0
    %v96 = vmul.f32 %v91, %v92
    %v97 = vmul.f32 %v90, %v93
    %v98 = vmul.f32 %v89, %v94
    %v99 = vmul.f32 %v88, %v95
    %100 = vrot.lane.b32.xlu0 %v73, 16
    %v101 = vpop.permute.xlu0 %100
    %102 = vrot.lane.b32.xlu0 %v74, 16
    %v103 = vpop.permute.xlu0 %102
    %104 = vrot.lane.b32.xlu0 %v75, 16
    %v105 = vpop.permute.xlu0 %104
    %106 = vrot.lane.b32.xlu0 %v76, 16
    %v107 = vpop.permute.xlu0 %106
    %vm108 = vcmp.lt.s32.totalorder %v86, 16
    %v109 = vsel %vm108, %v105, %v107
    %v110 = vsel %vm108, %v103, %v105
    %v111 = vsel %vm108, %v101, %v103
    %v112 = vsel %vm108, %v107, %v101
    %v113 = vperm.slane %v64, 1
    %v114 = vperm.slane %v65, 1
    %v115 = vperm.slane %v66, 1
    %v116 = vperm.slane %v67, 1
    %v117 = vmul.f32 %v112, %v113
    %v118 = vmul.f32 %v111, %v114
    %v119 = vmul.f32 %v110, %v115
    %v120 = vmul.f32 %v109, %v116
    %121 = vrot.lane.b32.xlu0 %v73, 15
    %v122 = vpop.permute.xlu0 %121
    %123 = vrot.lane.b32.xlu0 %v74, 15
    %v124 = vpop.permute.xlu0 %123
    %125 = vrot.lane.b32.xlu0 %v75, 15
    %v126 = vpop.permute.xlu0 %125
    %127 = vrot.lane.b32.xlu0 %v76, 15
    %v128 = vpop.permute.xlu0 %127
    %vm129 = vcmp.lt.s32.totalorder %v86, 15
    %v130 = vsel %vm129, %v126, %v128
    %v131 = vsel %vm129, %v124, %v126
    %v132 = vsel %vm129, %v122, %v124
    %v133 = vsel %vm129, %v128, %v122
    %v134 = vperm.slane %v64, 2
    %v135 = vperm.slane %v65, 2
    %v136 = vperm.slane %v66, 2
    %v137 = vperm.slane %v67, 2
    %v138 = vmul.f32 %v133, %v134
    %v139 = vmul.f32 %v132, %v135
    %v140 = vmul.f32 %v131, %v136
    %v141 = vmul.f32 %v130, %v137
    %142 = vrot.lane.b32.xlu0 %v73, 1
    %v143 = vpop.permute.xlu0 %142
    %144 = vrot.lane.b32.xlu0 %v74, 1
    %v145 = vpop.permute.xlu0 %144
    %146 = vrot.lane.b32.xlu0 %v75, 1
    %v147 = vpop.permute.xlu0 %146
    %148 = vrot.lane.b32.xlu0 %v76, 1
    %v149 = vpop.permute.xlu0 %148
    %vm150 = vcmp.lt.s32.totalorder %v86, 1
    %v151 = vsel %vm150, %v147, %v149
    %v152 = vsel %vm150, %v145, %v147
    %v153 = vsel %vm150, %v143, %v145
    %v154 = vsel %vm150, %v149, %v143
    %v155 = vperm.slane %v64, 3
    %v156 = vperm.slane %v65, 3
    %v157 = vperm.slane %v66, 3
    %v158 = vperm.slane %v67, 3
    %v159 = vmul.f32 %v154, %v155
    %v160 = vmul.f32 %v153, %v156
    %v161 = vmul.f32 %v152, %v157
    %v162 = vmul.f32 %v151, %v158
    %163 = vrot.lane.b32.xlu0 %v73, 127
    %v164 = vpop.permute.xlu0 %163
    %165 = vrot.lane.b32.xlu0 %v74, 127
    %v166 = vpop.permute.xlu0 %165
    %167 = vrot.lane.b32.xlu0 %v75, 127
    %v168 = vpop.permute.xlu0 %167
    %169 = vrot.lane.b32.xlu0 %v76, 127
    %v170 = vpop.permute.xlu0 %169
    %vm171 = vcmp.lt.s32.totalorder %v86, 127
    %v172 = vsel %vm171, %v168, %v170
    %v173 = vsel %vm171, %v166, %v168
    %v174 = vsel %vm171, %v164, %v166
    %v175 = vsel %vm171, %v170, %v164
    %v176 = vperm.slane %v64, 5
    %v177 = vperm.slane %v65, 5
    %v178 = vperm.slane %v66, 5
    %v179 = vperm.slane %v67, 5
    %v180 = vmul.f32 %v174, %v176
    %v181 = vmul.f32 %v173, %v177
    %v182 = vmul.f32 %v172, %v178
    %v183 = vmul.f32 %v175, %v179
    %184 = vrot.lane.b32.xlu0 %v73, 113
    %v185 = vpop.permute.xlu0 %184
    %186 = vrot.lane.b32.xlu0 %v74, 113
    %v187 = vpop.permute.xlu0 %186
    %188 = vrot.lane.b32.xlu0 %v75, 113
    %v189 = vpop.permute.xlu0 %188
    %190 = vrot.lane.b32.xlu0 %v76, 113
    %v191 = vpop.permute.xlu0 %190
    %vm192 = vcmp.lt.s32.totalorder %v86, 113
    %v193 = vsel %vm192, %v189, %v191
    %v194 = vsel %vm192, %v187, %v189
    %v195 = vsel %vm192, %v185, %v187
    %v196 = vsel %vm192, %v191, %v185
    %v197 = vperm.slane %v64, 6
    %v198 = vperm.slane %v65, 6
    %v199 = vperm.slane %v66, 6
    %v200 = vperm.slane %v67, 6
    %v201 = vmul.f32 %v195, %v197
    %v202 = vmul.f32 %v194, %v198
    %v203 = vmul.f32 %v193, %v199
    %v204 = vmul.f32 %v196, %v200
    %205 = vrot.lane.b32.xlu0 %v73, 112
    %v206 = vpop.permute.xlu0 %205
    %207 = vrot.lane.b32.xlu0 %v74, 112
    %v208 = vpop.permute.xlu0 %207
    %209 = vrot.lane.b32.xlu0 %v75, 112
    %v210 = vpop.permute.xlu0 %209
    %211 = vrot.lane.b32.xlu0 %v76, 112
    %v212 = vpop.permute.xlu0 %211
    %vm213 = vcmp.lt.s32.totalorder %v86, 112
    %v214 = vsel %vm213, %v210, %v212
    %v215 = vsel %vm213, %v208, %v210
    %v216 = vsel %vm213, %v206, %v208
    %v217 = vsel %vm213, %v212, %v206
    %v218 = vperm.slane %v64, 7
    %v219 = vperm.slane %v65, 7
    %v220 = vperm.slane %v66, 7
    %v221 = vperm.slane %v67, 7
    %v222 = vmul.f32 %v216, %v218
    %v223 = vmul.f32 %v215, %v219
    %v224 = vmul.f32 %v214, %v220
    %v225 = vmul.f32 %v217, %v221
    %226 = vrot.lane.b32.xlu0 %v73, 111
    %v227 = vpop.permute.xlu0 %226
    %228 = vrot.lane.b32.xlu0 %v74, 111
    %v229 = vpop.permute.xlu0 %228
    %230 = vrot.lane.b32.xlu0 %v75, 111
    %v231 = vpop.permute.xlu0 %230
    %232 = vrot.lane.b32.xlu0 %v76, 111
    %v233 = vpop.permute.xlu0 %232
    %vm234 = vcmp.lt.s32.totalorder %v86, 111
    %v235 = vsel %vm234, %v231, %v233
    %v236 = vsel %vm234, %v229, %v231
    %v237 = vsel %vm234, %v227, %v229
    %v238 = vsel %vm234, %v233, %v227
    %v239 = vperm.slane %v68, 0
    %v240 = vperm.slane %v69, 0
    %v241 = vperm.slane %v70, 0
    %v242 = vperm.slane %v71, 0
    %v243 = vmul.f32 %v237, %v239
    %v244 = vmul.f32 %v236, %v240
    %v245 = vmul.f32 %v235, %v241
    %v246 = vmul.f32 %v238, %v242
    %v247 = vld [vmem:[%s1] sm:$0xff]
    %249 = vset.pattern.permute.xlu0 0
    %250 = vperm.xlu0 %249, %v72
    %v251 = vpop.permute.xlu0 %250
    %vm253 = vcmask 588800
    %v255 = vsel %vm253, %v247, 0
    %257 = vmatpush.msra.mxu0 0.0
    %258 = vmatpush.msra.mxu0 0.0
    %259 = vmatpush.msra.mxu0 0.0
    %260 = vmatpush.msra.mxu0 0.0
    %261 = vmatpush.msra.mxu0 0.0
    %262 = vmatpush.msra.mxu0 0.0
    %263 = vmatpush.msra.mxu0 0.0
    %264 = vmatpush.msra.mxu0 %v243
    %265 = vmatpush.msra.mxu0 %v222
    %266 = vmatpush.msra.mxu0 %v201
    %267 = vmatpush.msra.mxu0 %v180
    %268 = vmatpush.msra.mxu0 %v73
    %269 = vmatpush.msra.mxu0 %v159
    %270 = vmatpush.msra.mxu0 %v138
    %271 = vmatpush.msra.mxu0 %v117
    %272 = vmatpush.msra.mxu0 %v96
    %273 = vmatmul.f32.gmra.mxu0 %v255
    %v274 = vpop.f32.mrf.mxu0
    %v275 = vadd.f32 %v251, %v274
    %276 = vdwg.mxu0
    %277 = vmatpush.msra.mxu0 0.0
    %278 = vmatpush.msra.mxu0 0.0
    %279 = vmatpush.msra.mxu0 0.0
    %280 = vmatpush.msra.mxu0 0.0
    %281 = vmatpush.msra.mxu0 0.0
    %282 = vmatpush.msra.mxu0 0.0
    %283 = vmatpush.msra.mxu0 0.0
    %284 = vmatpush.msra.mxu0 %v244
    %285 = vmatpush.msra.mxu0 %v223
    %286 = vmatpush.msra.mxu0 %v202
    %287 = vmatpush.msra.mxu0 %v181
    %288 = vmatpush.msra.mxu0 %v74
    %289 = vmatpush.msra.mxu0 %v160
    %290 = vmatpush.msra.mxu0 %v139
    %291 = vmatpush.msra.mxu0 %v118
    %292 = vmatpush.msra.mxu0 %v97
    %293 = vmatmul.f32.gmra.mxu0 %v255
    %v294 = vpop.f32.mrf.mxu0
    %v295 = vadd.f32 %v251, %v294
    %296 = vdwg.mxu0
    %297 = vmatpush.msra.mxu0 0.0
    %298 = vmatpush.msra.mxu0 0.0
    %299 = vmatpush.msra.mxu0 0.0
    %300 = vmatpush.msra.mxu0 0.0
    %301 = vmatpush.msra.mxu0 0.0
    %302 = vmatpush.msra.mxu0 0.0
    %303 = vmatpush.msra.mxu0 0.0
    %304 = vmatpush.msra.mxu0 %v245
    %305 = vmatpush.msra.mxu0 %v224
    %306 = vmatpush.msra.mxu0 %v203
    %307 = vmatpush.msra.mxu0 %v182
    %308 = vmatpush.msra.mxu0 %v75
    %309 = vmatpush.msra.mxu0 %v161
    %310 = vmatpush.msra.mxu0 %v140
    %311 = vmatpush.msra.mxu0 %v119
    %312 = vmatpush.msra.mxu0 %v98
    %313 = vmatmul.f32.gmra.mxu0 %v255
    %v314 = vpop.f32.mrf.mxu0
    %v315 = vadd.f32 %v251, %v314
    %316 = vdwg.mxu0
    %317 = vmatpush.msra.mxu0 0.0
    %318 = vmatpush.msra.mxu0 0.0
    %319 = vmatpush.msra.mxu0 0.0
    %320 = vmatpush.msra.mxu0 0.0
    %321 = vmatpush.msra.mxu0 0.0
    %322 = vmatpush.msra.mxu0 0.0
    %323 = vmatpush.msra.mxu0 0.0
    %324 = vmatpush.msra.mxu0 %v246
    %325 = vmatpush.msra.mxu0 %v225
    %326 = vmatpush.msra.mxu0 %v204
    %327 = vmatpush.msra.mxu0 %v183
    %328 = vmatpush.msra.mxu0 %v76
    %329 = vmatpush.msra.mxu0 %v162
    %330 = vmatpush.msra.mxu0 %v141
    %331 = vmatpush.msra.mxu0 %v120
    %332 = vmatpush.msra.mxu0 %v99
    %333 = vmatmul.f32.gmra.mxu0 %v255
    %v334 = vpop.f32.mrf.mxu0
    %v335 = vadd.f32 %v251, %v334
    %336 = vdwg.mxu0
    %v337 = vmax.f32 %v275, 0.0
    %v338 = vmax.f32 %v295, 0.0
    %v339 = vmax.f32 %v315, 0.0
    %v340 = vmax.f32 %v335, 0.0
    %v341 = vadd.f32 %v337, %v338
    %v342 = vadd.f32 %v341, %v339
    %v343 = vadd.f32 %v342, %v340
    %344 = vadd.xlane.f32.xlu0 %v343
    %v345 = vpop.xlane.xlu0 %344
    %v346 = vmul.f32 %v345, 0.001953125
    %v347 = vsub.f32 %v337, %v346
    %v348 = vsub.f32 %v338, %v346
    %v349 = vsub.f32 %v339, %v346
    %v350 = vsub.f32 %v340, %v346
    %v351 = vmul.f32 %v347, %v347
    %v352 = vmul.f32 %v348, %v348
    %v353 = vmul.f32 %v349, %v349
    %v354 = vmul.f32 %v350, %v350
    %v355 = vadd.f32 %v351, %v352
    %v356 = vadd.f32 %v355, %v353
    %v357 = vadd.f32 %v356, %v354
    %358 = vadd.xlane.f32.xlu0 %v357
    %v359 = vpop.xlane.xlu0 %358
    %v360 = vmul.f32 %v359, 0.001953125
    %v361 = vadd.f32 %v360, 1e-05
    %v362 = vrsqrt.pop %v361
    %v363 = vmul.f32 %v362, %v361
    %v364 = vmul.f32 %v363, %v362
    %v365 = vmul.f32 0.5, %v364
    %v366 = vsub.f32 1.5, %v365
    %v367 = vmul.f32 %v362, %v366
    %vm368 = vweird.f32 %v361
    %vm369 = vweird.f32 %v362
    %vm370 = vmor %vm368, %vm369
    %v371 = vsel %vm370, %v362, %v367
    %v372 = vmul.f32 %v72, %v371
    %v373 = vmul.f32 %v346, %v372
    %375 = vrot.lane.b32.xlu0 %v373, 1
    %v376 = vpop.permute.xlu0 %375
    %v378 = vsub.f32 %v72, %v376
    %380 = vset.pattern.permute.xlu0 1
    %381 = vperm.xlu0 %380, %v372
    %v382 = vpop.permute.xlu0 %381
    %v384 = vmul.f32 %v337, %v382
    %v385 = vmul.f32 %v338, %v382
    %v386 = vmul.f32 %v339, %v382
    %v387 = vmul.f32 %v340, %v382
    %389 = vset.pattern.permute.xlu0 2
    %390 = vperm.xlu0 %389, %v378
    %v391 = vpop.permute.xlu0 %390
    %v393 = vadd.f32 %v384, %v391
    %v394 = vadd.f32 %v385, %v391
    %v395 = vadd.f32 %v386, %v391
    %v396 = vadd.f32 %v387, %v391
    %397 = vrot.lane.b32.xlu0 %v393, 17
    %v398 = vpop.permute.xlu0 %397
    %399 = vrot.lane.b32.xlu0 %v394, 17
    %v400 = vpop.permute.xlu0 %399
    %401 = vrot.lane.b32.xlu0 %v395, 17
    %v402 = vpop.permute.xlu0 %401
    %403 = vrot.lane.b32.xlu0 %v396, 17
    %v404 = vpop.permute.xlu0 %403
    %v405 = vsel %vm87, %v402, %v404
    %v406 = vsel %vm87, %v400, %v402
    %v407 = vsel %vm87, %v398, %v400
    %v408 = vsel %vm87, %v404, %v398
    %v409 = vmul.f32 %v408, %v92
    %v410 = vmul.f32 %v407, %v93
    %v411 = vmul.f32 %v406, %v94
    %v412 = vmul.f32 %v405, %v95
    %413 = vrot.lane.b32.xlu0 %v393, 16
    %v414 = vpop.permute.xlu0 %413
    %415 = vrot.lane.b32.xlu0 %v394, 16
    %v416 = vpop.permute.xlu0 %415
    %417 = vrot.lane.b32.xlu0 %v395, 16
    %v418 = vpop.permute.xlu0 %417
    %419 = vrot.lane.b32.xlu0 %v396, 16
    %v420 = vpop.permute.xlu0 %419
    %v421 = vsel %vm108, %v418, %v420
    %v422 = vsel %vm108, %v416, %v418
    %v423 = vsel %vm108, %v414, %v416
    %v424 = vsel %vm108, %v420, %v414
    %v425 = vmul.f32 %v424, %v113
    %v426 = vmul.f32 %v423, %v114
    %v427 = vmul.f32 %v422, %v115
    %v428 = vmul.f32 %v421, %v116
    %429 = vrot.lane.b32.xlu0 %v393, 15
    %v430 = vpop.permute.xlu0 %429
    %431 = vrot.lane.b32.xlu0 %v394, 15
    %v432 = vpop.permute.xlu0 %431
    %433 = vrot.lane.b32.xlu0 %v395, 15
    %v434 = vpop.permute.xlu0 %433
    %435 = vrot.lane.b32.xlu0 %v396, 15
    %v436 = vpop.permute.xlu0 %435
    %v437 = vsel %vm129, %v434, %v436
    %v438 = vsel %vm129, %v432, %v434
    %v439 = vsel %vm129, %v430, %v432
    %v440 = vsel %vm129, %v436, %v430
    %v441 = vmul.f32 %v440, %v134
    %v442 = vmul.f32 %v439, %v135
    %v443 = vmul.f32 %v438, %v136
    %v444 = vmul.f32 %v437, %v137
    %445 = vrot.lane.b32.xlu0 %v393, 1
    %v446 = vpop.permute.xlu0 %445
    %447 = vrot.lane.b32.xlu0 %v394, 1
    %v448 = vpop.permute.xlu0 %447
    %449 = vrot.lane.b32.xlu0 %v395, 1
    %v450 = vpop.permute.xlu0 %449
    %451 = vrot.lane.b32.xlu0 %v396, 1
    %v452 = vpop.permute.xlu0 %451
    %v453 = vsel %vm150, %v450, %v452
    %v454 = vsel %vm150, %v448, %v450
    %v455 = vsel %vm150, %v446, %v448
    %v456 = vsel %vm150, %v452, %v446
    %v457 = vmul.f32 %v456, %v155
    %v458 = vmul.f32 %v455, %v156
    %v459 = vmul.f32 %v454, %v157
    %v460 = vmul.f32 %v453, %v158
    %461 = vrot.lane.b32.xlu0 %v393, 127
    %v462 = vpop.permute.xlu0 %461
    %463 = vrot.lane.b32.xlu0 %v394, 127
    %v464 = vpop.permute.xlu0 %463
    %465 = vrot.lane.b32.xlu0 %v395, 127
    %v466 = vpop.permute.xlu0 %465
    %467 = vrot.lane.b32.xlu0 %v396, 127
    %v468 = vpop.permute.xlu0 %467
    %v469 = vsel %vm171, %v466, %v468
    %v470 = vsel %vm171, %v464, %v466
    %v471 = vsel %vm171, %v462, %v464
    %v472 = vsel %vm171, %v468, %v462
    %v473 = vmul.f32 %v471, %v176
    %v474 = vmul.f32 %v470, %v177
    %v475 = vmul.f32 %v469, %v178
    %v476 = vmul.f32 %v472, %v179
    %477 = vrot.lane.b32.xlu0 %v393, 113
    %v478 = vpop.permute.xlu0 %477
    %479 = vrot.lane.b32.xlu0 %v394, 113
    %v480 = vpop.permute.xlu0 %479
    %481 = vrot.lane.b32.xlu0 %v395, 113
    %v482 = vpop.permute.xlu0 %481
    %483 = vrot.lane.b32.xlu0 %v396, 113
    %v484 = vpop.permute.xlu0 %483
    %v485 = vsel %vm192, %v482, %v484
    %v486 = vsel %vm192, %v480, %v482
    %v487 = vsel %vm192, %v478, %v480
    %v488 = vsel %vm192, %v484, %v478
    %v489 = vmul.f32 %v487, %v197
    %v490 = vmul.f32 %v486, %v198
    %v491 = vmul.f32 %v485, %v199
    %v492 = vmul.f32 %v488, %v200
    %493 = vrot.lane.b32.xlu0 %v393, 112
    %v494 = vpop.permute.xlu0 %493
    %495 = vrot.lane.b32.xlu0 %v394, 112
    %v496 = vpop.permute.xlu0 %495
    %497 = vrot.lane.b32.xlu0 %v395, 112
    %v498 = vpop.permute.xlu0 %497
    %499 = vrot.lane.b32.xlu0 %v396, 112
    %v500 = vpop.permute.xlu0 %499
    %v501 = vsel %vm213, %v498, %v500
    %v502 = vsel %vm213, %v496, %v498
    %v503 = vsel %vm213, %v494, %v496
    %v504 = vsel %vm213, %v500, %v494
    %v505 = vmul.f32 %v503, %v218
    %v506 = vmul.f32 %v502, %v219
    %v507 = vmul.f32 %v501, %v220
    %v508 = vmul.f32 %v504, %v221
    %509 = vrot.lane.b32.xlu0 %v393, 111
    %v510 = vpop.permute.xlu0 %509
    %511 = vrot.lane.b32.xlu0 %v394, 111
    %v512 = vpop.permute.xlu0 %511
    %513 = vrot.lane.b32.xlu0 %v395, 111
    %v514 = vpop.permute.xlu0 %513
    %515 = vrot.lane.b32.xlu0 %v396, 111
    %v516 = vpop.permute.xlu0 %515
    %v517 = vsel %vm234, %v514, %v516
    %v518 = vsel %vm234, %v512, %v514
    %v519 = vsel %vm234, %v510, %v512
    %v520 = vsel %vm234, %v516, %v510
    %v521 = vmul.f32 %v519, %v239
    %v522 = vmul.f32 %v518, %v240
    %v523 = vmul.f32 %v517, %v241
    %v524 = vmul.f32 %v520, %v242
    %v525 = vld [vmem:[#allocation5] sm:$0xff]
    %526 = vset.pattern.permute.xlu0 3
    %527 = vperm.xlu0 %526, %v72
    %v528 = vpop.permute.xlu0 %527
    %v531 = vsel %vm253, %v525, 0
    %533 = vmatpush.msra.mxu0 0.0
    %534 = vmatpush.msra.mxu0 0.0
    %535 = vmatpush.msra.mxu0 0.0
    %536 = vmatpush.msra.mxu0 0.0
    %537 = vmatpush.msra.mxu0 0.0
    %538 = vmatpush.msra.mxu0 0.0
    %539 = vmatpush.msra.mxu0 0.0
    %540 = vmatpush.msra.mxu0 %v521
    %541 = vmatpush.msra.mxu0 %v505
    %542 = vmatpush.msra.mxu0 %v489
    %543 = vmatpush.msra.mxu0 %v473
    %544 = vmatpush.msra.mxu0 %v393
    %545 = vmatpush.msra.mxu0 %v457
    %546 = vmatpush.msra.mxu0 %v441
    %547 = vmatpush.msra.mxu0 %v425
    %548 = vmatpush.msra.mxu0 %v409
    %549 = vmatmul.f32.gmra.mxu0 %v531
    %v550 = vpop.f32.mrf.mxu0
    %v551 = vadd.f32 %v528, %v550
    %552 = vdwg.mxu0
    %553 = vmatpush.msra.mxu0 0.0
    %554 = vmatpush.msra.mxu0 0.0
    %555 = vmatpush.msra.mxu0 0.0
    %556 = vmatpush.msra.mxu0 0.0
    %557 = vmatpush.msra.mxu0 0.0
    %558 = vmatpush.msra.mxu0 0.0
    %559 = vmatpush.msra.mxu0 0.0
    %560 = vmatpush.msra.mxu0 %v522
    %561 = vmatpush.msra.mxu0 %v506
    %562 = vmatpush.msra.mxu0 %v490
    %563 = vmatpush.msra.mxu0 %v474
    %564 = vmatpush.msra.mxu0 %v394
    %565 = vmatpush.msra.mxu0 %v458
    %566 = vmatpush.msra.mxu0 %v442
    %567 = vmatpush.msra.mxu0 %v426
    %568 = vmatpush.msra.mxu0 %v410
    %569 = vmatmul.f32.gmra.mxu0 %v531
    %v570 = vpop.f32.mrf.mxu0
    %v571 = vadd.f32 %v528, %v570
    %572 = vdwg.mxu0
    %573 = vmatpush.msra.mxu0 0.0
    %574 = vmatpush.msra.mxu0 0.0
    %575 = vmatpush.msra.mxu0 0.0
    %576 = vmatpush.msra.mxu0 0.0
    %577 = vmatpush.msra.mxu0 0.0
    %578 = vmatpush.msra.mxu0 0.0
    %579 = vmatpush.msra.mxu0 0.0
    %580 = vmatpush.msra.mxu0 %v523
    %581 = vmatpush.msra.mxu0 %v507
    %582 = vmatpush.msra.mxu0 %v491
    %583 = vmatpush.msra.mxu0 %v475
    %584 = vmatpush.msra.mxu0 %v395
    %585 = vmatpush.msra.mxu0 %v459
    %586 = vmatpush.msra.mxu0 %v443
    %587 = vmatpush.msra.mxu0 %v427
    %588 = vmatpush.msra.mxu0 %v411
    %589 = vmatmul.f32.gmra.mxu0 %v531
    %v590 = vpop.f32.mrf.mxu0
    %v591 = vadd.f32 %v528, %v590
    %592 = vdwg.mxu0
    %593 = vmatpush.msra.mxu0 0.0
    %594 = vmatpush.msra.mxu0 0.0
    %595 = vmatpush.msra.mxu0 0.0
    %596 = vmatpush.msra.mxu0 0.0
    %597 = vmatpush.msra.mxu0 0.0
    %598 = vmatpush.msra.mxu0 0.0
    %599 = vmatpush.msra.mxu0 0.0
    %600 = vmatpush.msra.mxu0 %v524
    %601 = vmatpush.msra.mxu0 %v508
    %602 = vmatpush.msra.mxu0 %v492
    %603 = vmatpush.msra.mxu0 %v476
    %604 = vmatpush.msra.mxu0 %v396
    %605 = vmatpush.msra.mxu0 %v460
    %606 = vmatpush.msra.mxu0 %v444
    %607 = vmatpush.msra.mxu0 %v428
    %608 = vmatpush.msra.mxu0 %v412
    %609 = vmatmul.f32.gmra.mxu0 %v531
    %v610 = vpop.f32.mrf.mxu0
    %v611 = vadd.f32 %v528, %v610
    %612 = vdwg.mxu0
    %613 = vst [vmem:[#allocation8] sm:$0xff] %v551
    %614 = vst [vmem:[#allocation8 + $0x8] sm:$0xff] %v571
    %s615 = scalar_lea.vmem [#allocation8], 16
    %616 = vst [vmem:[%s615] sm:$0xff] %v591
    %617 = vst [vmem:[%s615 + $0x8] sm:$0xff] %v611
    // Predicated region
    $region34: #{tpu_custom_call.1} parent=1 // pred_check
      _
    $region35: #{tpu_custom_call.1} parent=1 // pred_check_branch
      %619 = sbr.rel (0) target = $region37
    $region36: #{tpu_custom_call.1} parent=1 // pred_region
      %621 = vsyncadd [#allocation4], 0
      %s622 = sshll.u32 [#allocation8], 4
      %s623 = int_to_ptr.vmem [resolvable:$true] %s622
      %s624 = sshll.u32 %s5, 4
      %s625 = int_to_ptr.hbm [resolvable:$true] %s624
      %630 = dma.vmem_to_hbm [thread:$0]  %s623, 512, %s625, [#allocation4], 256, 256, 16
    $region37: #{tpu_custom_call.1} parent=1 // pred_fallthru
      _
    // Predicated region
    $region38: #{tpu_custom_call.1} parent=1 // pred_check
      _
    $region39: #{tpu_custom_call.1} parent=1 // pred_check_branch
      %632 = sbr.rel (0) target = $region41
    $region40: #{tpu_custom_call.1} parent=1 // pred_region
      %634 = dma.done [#allocation4], 512
    $region41: #{tpu_custom_call.1} parent=1 // pred_fallthru
      _
    %635 = vsyncpa [#allocation3], 1
    %636 = vsyncpa [#allocation6], 1
    %637 = vsyncpa [#allocation4], 1

</llo_original>
